<compile_context>
chip_gen: v5e
topology: v5e:2x2
jax: 0.10.0
libtpu: 0.0.40
codegen_flags: <defaults>
</compile_context>

<pallas_src>
import functools

import jax
import jax.numpy as jnp
from jax.experimental import pallas as pl
from jax.experimental.pallas import tpu as pltpu


# ------------------------------- kernel --------------------------------------

def _pathway_kernel(sfc, head_sliced,
                    x_ref, w1_ref, b1_ref, ws_ref, bs_ref, wop_ref, bo_ref,
                    slab_ref):
    # fc1 + ReLU (f32 accumulation on MXU)
    h = jnp.dot(x_ref[...], w1_ref[...], preferred_element_type=jnp.float32)
    h = jnp.maximum(h + b1_ref[...], 0.0)

    # fused sfc1 | sfc2 + ReLU, packed along lanes: (tile_b, 2*sfc)
    o12 = jnp.dot(h.astype(ws_ref.dtype), ws_ref[...],
                  preferred_element_type=jnp.float32)
    o12 = jnp.maximum(o12 + bs_ref[...], 0.0)

    # output head.
    #  - head_sliced (sfc % 128 == 0): take the free, vreg-aligned lane slice
    #    o12[:, sfc:] and use the un-padded (sfc, out) weight.
    #  - otherwise: wop is (2*sfc, out) with zero rows for the out1 half, so
    #    the packed o12 feeds the head matmul with no in-kernel lane slice.
    head_in = o12[:, sfc:] if head_sliced else o12
    o = jnp.dot(head_in.astype(wop_ref.dtype), wop_ref[...],
                preferred_element_type=jnp.float32) + bo_ref[...]

    # single lane-dense store: [out1 | out2 | out | zero-pad]
    tile_b = o12.shape[0]
    pad = slab_ref.shape[-1] - (o12.shape[-1] + o.shape[-1])
    pieces = [o12, o]
    if pad > 0:
        pieces.append(jnp.zeros((tile_b, pad), jnp.float32))
    slab_ref[...] = jnp.concatenate(pieces, axis=-1)


# --------------------------- one-time param prep ------------------------------

def prepare_params(params, operand_dtype=jnp.float32):
    """Transpose to (in, out), fuse ws1/ws2, build the head weight.

    params: PyTorch layout — weight (out_features, in_features), bias (out,).
    operand_dtype: jnp.float32 (exact) or jnp.bfloat16 (halved HBM traffic on
    v6e/v7x; accumulation stays f32).  Returned dict contains arrays only.
    """
    sfc = params["ws1"].shape[0]
    out_sz = params["wo"].shape[0]

    w1 = params["w1"].T.astype(operand_dtype)                              # (in, hidden)
    ws = jnp.concatenate([params["ws1"].T, params["ws2"].T],
                         axis=1).astype(operand_dtype)                     # (hidden, 2*sfc)

    if sfc % 128 == 0:
        # aligned: head consumes the free lane slice o12[:, sfc:] in-kernel.
        wop = params["wo"].T.astype(operand_dtype)                         # (sfc, out)
    else:
        # unaligned (e.g. sfc=16): zero-pad so packed o12 feeds the head.
        wop = jnp.concatenate(
            [jnp.zeros((sfc, out_sz), params["wo"].dtype), params["wo"].T],
            axis=0).astype(operand_dtype)                                  # (2*sfc, out)

    b1 = params["b1"].reshape(1, -1).astype(jnp.float32)
    bs = jnp.concatenate([params["bs1"], params["bs2"]]).reshape(1, -1).astype(jnp.float32)
    bo = params["bo"].reshape(1, -1).astype(jnp.float32)
    return dict(w1=w1, b1=b1, ws=ws, bs=bs, wop=wop, bo=bo)


# ------------------------------ sizing helpers --------------------------------

def _vmem_cap_bytes():
    """Physical VMEM per core; falls back to the v7x 64 MiB if unknown."""
    default = 64 * 1024 * 1024
    try:
        info = pltpu.get_tpu_info()
        for attr in ("vmem_capacity_bytes", "vmem_size_bytes", "vmem_bytes"):
            v = getattr(info, attr, None)
            if v:
                return int(v)
    except Exception:
        pass
    return default


def _choose_tile_b(B, max_tile_b, per_row_bytes, weight_bytes, vmem_budget):
    """Largest multiple-of-8 batch tile fitting the VMEM budget; keeps >= 2
    grid steps for large B so both v7x TensorCores / megacore get work."""
    headroom = 4 * 1024 * 1024
    usable = vmem_budget - 2 * weight_bytes - headroom
    fit = (usable // max(per_row_bytes, 1)) if usable > 0 else 8
    fit = max(8, (int(fit) // 8) * 8)
    tile = min(max_tile_b, fit)
    if B <= tile and B <= 1024:
        return B                                  # one full-batch block
    half = -(-B // 2)                             # ceil(B/2)
    half = -(-half // 8) * 8                      # round up to multiple of 8
    tile = max(8, min(tile, half))
    return (tile // 8) * 8


# --------------------------------- forward ------------------------------------

@functools.partial(jax.jit, static_argnames=("max_tile_b",))
def nn_pathway2_forward(x, prep, max_tile_b=4096):
    """x: (B, input_size); prep: output of prepare_params."""
    B, in_sz = x.shape
    hidden = prep["w1"].shape[1]
    two_sfc = prep["ws"].shape[1]
    sfc = two_sfc // 2
    out_sz = prep["wop"].shape[1]
    head_sliced = prep["wop"].shape[0] == sfc

    op_dtype = prep["w1"].dtype
    x_op = x.astype(op_dtype)
    elt = jnp.dtype(op_dtype).itemsize

    # lane-dense packed output width: [out1 | out2 | out] padded to 128n
    padded = -(-(two_sfc + out_sz) // 128) * 128

    # per-row VMEM demand: double-buffered x and slab + live f32 intermediates
    per_row = (2 * in_sz * elt + 2 * padded * 4
               + (hidden + two_sfc + out_sz + padded) * 4)
    weight_bytes = sum(int(a.size) * jnp.dtype(a.dtype).itemsize
                       for a in prep.values())

    vmem_usable = int(_vmem_cap_bytes() * 0.78)   # ~50 MiB v7x, ~100 MiB v5e/v6e
    tile_b = _choose_tile_b(B, max_tile_b, per_row, weight_bytes, vmem_usable)
    grid = (pl.cdiv(B, tile_b),)

    vmem_need = 2 * weight_bytes + tile_b * per_row + 4 * 1024 * 1024
    vmem_limit = int(min(vmem_usable, max(vmem_need, 16 * 1024 * 1024)))

    def resident(shape):
        # same block every grid step -> fetched once, stays in VMEM
        return pl.BlockSpec(shape, lambda i: (0, 0))

    in_specs = [
        pl.BlockSpec((tile_b, in_sz), lambda i: (i, 0)),   # x (pipelined)
        resident((in_sz, hidden)),                         # w1
        resident((1, hidden)),                             # b1
        resident((hidden, two_sfc)),                       # ws (fused sfc1|sfc2)
        resident((1, two_sfc)),                            # bs (fused)
        resident(tuple(prep["wop"].shape)),                # head weight
        resident((1, out_sz)),                             # bo
    ]
    out_specs = pl.BlockSpec((tile_b, padded), lambda i: (i, 0))
    out_shape = jax.ShapeDtypeStruct((B, padded), jnp.float32)

    # useful flops only (head counted as sfc*out, not the zero-padded half)
    flops = 2 * B * (in_sz * hidden + hidden * two_sfc + sfc * out_sz)
    bytes_accessed = (x_op.size * elt + weight_bytes + B * padded * 4)
    cost = pl.CostEstimate(flops=flops, transcendentals=0,
                           bytes_accessed=int(bytes_accessed))

    kernel = functools.partial(_pathway_kernel, sfc, head_sliced)

    slab = pl.pallas_call(
        kernel,
        out_shape=out_shape,
        grid=grid,
        in_specs=in_specs,
        out_specs=out_specs,
        compiler_params=pltpu.CompilerParams(
            dimension_semantics=("parallel",),
            vmem_limit_bytes=vmem_limit),
        cost_estimate=cost,
    )(x_op, prep["w1"], prep["b1"], prep["ws"], prep["bs"],
      prep["wop"], prep["bo"])

    out1 = slab[:, :sfc]
    out2 = slab[:, sfc:two_sfc]
    out = slab[:, two_sfc:two_sfc + out_sz]
    val1 = jnp.sum(out1)   # computed outside the kernel; XLA fuses for free
    val2 = jnp.sum(out2)
    return out, val1, val2, out1, out2


# ----------------------------- reference & test -------------------------------

def _reference_forward(x, params):
    h = jnp.maximum(x @ params["w1"].T + params["b1"], 0.0)
    o1 = jnp.maximum(h @ params["ws1"].T + params["bs1"], 0.0)
    o2 = jnp.maximum(h @ params["ws2"].T + params["bs2"], 0.0)
    v1 = jnp.sum(o1)
    v2 = jnp.sum(o2)
    o = o2 @ params["wo"].T + params["bo"]
    return o, v1, v2, o1, o2


def _init_params(key, input_size, hidden_size, sfc_size, output_size):
    ks = jax.random.split(key, 8)

    def linear(kw, kb, fan_in, fan_out):
        bound = 1.0 / jnp.sqrt(fan_in)
        w = jax.random.uniform(kw, (fan_out, fan_in), jnp.float32, -bound, bound)
        b = jax.random.uniform(kb, (fan_out,), jnp.float32, -bound, bound)
        return w, b

    w1, b1 = linear(ks[0], ks[1], input_size, hidden_size)
    ws1, bs1 = linear(ks[2], ks[3], hidden_size, sfc_size)
    ws2, bs2 = linear(ks[4], ks[5], hidden_size, sfc_size)
    wo, bo = linear(ks[6], ks[7], sfc_size, output_size)
    return dict(w1=w1, b1=b1, ws1=ws1, bs1=bs1, ws2=ws2, bs2=bs2, wo=wo, bo=bo)


if __name__ == "__main__":
    key = jax.random.PRNGKey(0)
    k_x, k_p = jax.random.split(key)

    batch, input_size, hidden_size, sfc_size, output_size = 8, 16, 32, 16, 8
    x = jax.random.normal(k_x, (batch, input_size), jnp.float32)
    params = _init_params(k_p, input_size, hidden_size, sfc_size, output_size)

    prep = prepare_params(params)   # one-time weight fusion / transposition (f32)
    out, val1, val2, out1, out2 = nn_pathway2_forward(x, prep)
    jax.block_until_ready((out, val1, val2, out1, out2))

    # correctness check against plain-JAX reference (f32 compute preserved)
    r_out, r_v1, r_v2, r_o1, r_o2 = _reference_forward(x, params)
    assert jnp.allclose(out, r_out, atol=1e-5, rtol=1e-5)
    assert jnp.allclose(val1, r_v1, atol=1e-4, rtol=1e-5)
    assert jnp.allclose(val2, r_v2, atol=1e-4, rtol=1e-5)
    assert jnp.allclose(out1, r_o1, atol=1e-5, rtol=1e-5)
    assert jnp.allclose(out2, r_o2, atol=1e-5, rtol=1e-5)

    print("KERNEL_OK")
</pallas_src>

<mosaic_0001>
module attributes {stable_mosaic.version = 11 : i64} {
  func.func @_pathway_kernel(%arg0: i32, %arg1: memref<8x16xf32, #tpu.memory_space<vmem>>, %arg2: memref<16x32xf32, #tpu.memory_space<vmem>>, %arg3: memref<1x32xf32, #tpu.memory_space<vmem>>, %arg4: memref<32x32xf32, #tpu.memory_space<vmem>>, %arg5: memref<1x32xf32, #tpu.memory_space<vmem>>, %arg6: memref<32x8xf32, #tpu.memory_space<vmem>>, %arg7: memref<1x8xf32, #tpu.memory_space<vmem>>, %arg8: memref<8x128xf32, #tpu.memory_space<vmem>>) attributes {dimension_semantics = [#tpu.dimension_semantics<parallel>], iteration_bounds = array<i64: 1>, scalar_prefetch = 0 : i64, scratch_operands = 0 : i64, tpu.core_type = #tpu.core_type<tc>, window_params = [{transform_indices = @transform_0, window_bounds = array<i64: 8, 16>}, {pipeline_mode = #tpu.pipeline_mode<synchronous>, transform_indices = @transform_1, window_bounds = array<i64: 16, 32>}, {pipeline_mode = #tpu.pipeline_mode<synchronous>, transform_indices = @transform_2, window_bounds = array<i64: 1, 32>}, {pipeline_mode = #tpu.pipeline_mode<synchronous>, transform_indices = @transform_3, window_bounds = array<i64: 32, 32>}, {pipeline_mode = #tpu.pipeline_mode<synchronous>, transform_indices = @transform_4, window_bounds = array<i64: 1, 32>}, {pipeline_mode = #tpu.pipeline_mode<synchronous>, transform_indices = @transform_5, window_bounds = array<i64: 32, 8>}, {pipeline_mode = #tpu.pipeline_mode<synchronous>, transform_indices = @transform_6, window_bounds = array<i64: 1, 8>}, {transform_indices = @transform_7, window_bounds = array<i64: 8, 128>}]} {
    %c0 = arith.constant 0 : index
    %c0_0 = arith.constant 0 : index
    %0 = vector.load %arg1[%c0, %c0_0] : memref<8x16xf32, #tpu.memory_space<vmem>>, vector<8x16xf32>
    %c0_1 = arith.constant 0 : index
    %c0_2 = arith.constant 0 : index
    %1 = vector.load %arg2[%c0_1, %c0_2] : memref<16x32xf32, #tpu.memory_space<vmem>>, vector<16x32xf32>
    %cst = arith.constant dense<0.000000e+00> : vector<8x32xf32>
    %2 = tpu.matmul %0, %1, %cst {dimension_numbers = #tpu.dot_dimension_numbers<[1], [0], [0], [1], [0, 0, 1, 1], [], []>} : vector<8x16xf32>, vector<16x32xf32>, vector<8x32xf32> -> vector<8x32xf32>
    %c0_3 = arith.constant 0 : index
    %c0_4 = arith.constant 0 : index
    %3 = vector.load %arg3[%c0_3, %c0_4] : memref<1x32xf32, #tpu.memory_space<vmem>>, vector<1x32xf32>
    %4 = vector.broadcast %3 : vector<1x32xf32> to vector<8x32xf32>
    %5 = arith.addf %2, %4 : vector<8x32xf32>
    %cst_5 = arith.constant 0.000000e+00 : f32
    %6 = vector.broadcast %cst_5 : f32 to vector<8x32xf32>
    %7 = arith.maximumf %5, %6 : vector<8x32xf32>
    %c0_6 = arith.constant 0 : index
    %c0_7 = arith.constant 0 : index
    %8 = vector.load %arg4[%c0_6, %c0_7] : memref<32x32xf32, #tpu.memory_space<vmem>>, vector<32x32xf32>
    %cst_8 = arith.constant dense<0.000000e+00> : vector<8x32xf32>
    %9 = tpu.matmul %7, %8, %cst_8 {dimension_numbers = #tpu.dot_dimension_numbers<[1], [0], [0], [1], [0, 0, 1, 1], [], []>} : vector<8x32xf32>, vector<32x32xf32>, vector<8x32xf32> -> vector<8x32xf32>
    %c0_9 = arith.constant 0 : index
    %c0_10 = arith.constant 0 : index
    %10 = vector.load %arg5[%c0_9, %c0_10] : memref<1x32xf32, #tpu.memory_space<vmem>>, vector<1x32xf32>
    %11 = vector.broadcast %10 : vector<1x32xf32> to vector<8x32xf32>
    %12 = arith.addf %9, %11 : vector<8x32xf32>
    %cst_11 = arith.constant 0.000000e+00 : f32
    %13 = vector.broadcast %cst_11 : f32 to vector<8x32xf32>
    %14 = arith.maximumf %12, %13 : vector<8x32xf32>
    %c0_12 = arith.constant 0 : index
    %c0_13 = arith.constant 0 : index
    %15 = vector.load %arg6[%c0_12, %c0_13] : memref<32x8xf32, #tpu.memory_space<vmem>>, vector<32x8xf32>
    %cst_14 = arith.constant dense<0.000000e+00> : vector<8x8xf32>
    %16 = tpu.matmul %14, %15, %cst_14 {dimension_numbers = #tpu.dot_dimension_numbers<[1], [0], [0], [1], [0, 0, 1, 1], [], []>} : vector<8x32xf32>, vector<32x8xf32>, vector<8x8xf32> -> vector<8x8xf32>
    %c0_15 = arith.constant 0 : index
    %c0_16 = arith.constant 0 : index
    %17 = vector.load %arg7[%c0_15, %c0_16] : memref<1x8xf32, #tpu.memory_space<vmem>>, vector<1x8xf32>
    %18 = vector.broadcast %17 : vector<1x8xf32> to vector<8x8xf32>
    %19 = arith.addf %16, %18 : vector<8x8xf32>
    %cst_17 = arith.constant 0.000000e+00 : f32
    %20 = vector.broadcast %cst_17 : f32 to vector<8x88xf32>
    %21 = tpu.concatenate %14, %19, %20 in 1 : vector<8x32xf32>, vector<8x8xf32>, vector<8x88xf32> -> vector<8x128xf32>
    %c0_18 = arith.constant 0 : index
    %c0_19 = arith.constant 0 : index
    %22 = vector.load %arg8[%c0_18, %c0_19] : memref<8x128xf32, #tpu.memory_space<vmem>>, vector<8x128xf32>
    tpu.vector_store %arg8[%c0_18, %c0_19], %21 {strides = array<i32>} : memref<8x128xf32, #tpu.memory_space<vmem>>, vector<8x128xf32>,
    return
  }
  func.func @transform_0(%arg0: i32) -> (i32, i32) {
    %c0_i32 = arith.constant 0 : i32
    %c0_i32_0 = arith.constant 0 : i32
    return %arg0, %c0_i32 : i32, i32
  }
  func.func @transform_1(%arg0: i32) -> (i32, i32) {
    %c0_i32 = arith.constant 0 : i32
    %c0_i32_0 = arith.constant 0 : i32
    %c0_i32_1 = arith.constant 0 : i32
    return %c0_i32, %c0_i32_0 : i32, i32
  }
  func.func @transform_2(%arg0: i32) -> (i32, i32) {
    %c0_i32 = arith.constant 0 : i32
    %c0_i32_0 = arith.constant 0 : i32
    %c0_i32_1 = arith.constant 0 : i32
    return %c0_i32, %c0_i32_0 : i32, i32
  }
  func.func @transform_3(%arg0: i32) -> (i32, i32) {
    %c0_i32 = arith.constant 0 : i32
    %c0_i32_0 = arith.constant 0 : i32
    %c0_i32_1 = arith.constant 0 : i32
    return %c0_i32, %c0_i32_0 : i32, i32
  }
  func.func @transform_4(%arg0: i32) -> (i32, i32) {
    %c0_i32 = arith.constant 0 : i32
    %c0_i32_0 = arith.constant 0 : i32
    %c0_i32_1 = arith.constant 0 : i32
    return %c0_i32, %c0_i32_0 : i32, i32
  }
  func.func @transform_5(%arg0: i32) -> (i32, i32) {
    %c0_i32 = arith.constant 0 : i32
    %c0_i32_0 = arith.constant 0 : i32
    %c0_i32_1 = arith.constant 0 : i32
    return %c0_i32, %c0_i32_0 : i32, i32
  }
  func.func @transform_6(%arg0: i32) -> (i32, i32) {
    %c0_i32 = arith.constant 0 : i32
    %c0_i32_0 = arith.constant 0 : i32
    %c0_i32_1 = arith.constant 0 : i32
    return %c0_i32, %c0_i32_0 : i32, i32
  }
  func.func @transform_7(%arg0: i32) -> (i32, i32) {
    %c0_i32 = arith.constant 0 : i32
    %c0_i32_0 = arith.constant 0 : i32
    return %arg0, %c0_i32 : i32, i32
  }
}

</mosaic_0001>

<llo_original>
// kernel: nn_pathway2_forward.1
$region0: #{nn_pathway2_forward.1}
  #allocation0 [shape = 'u32[]', space=smem, size = 0x4, offset = 0x4, fixed_abs, tag = 'smem constant byte address 0x4 - core index']
  #allocation1 [shape = 'u32[72,128]{1,0:T(1,128)}', space=vmem, size = 0x9000, scoped, tag = 'internal scratch']
  %s0 = inlined_call_operand.vmem [shape: f32[8,16], index: 0, kind: input, shape index: {}]
  %s1 = inlined_call_operand.hbm [shape: f32[16,32], index: 1, kind: input, shape index: {}]
  %s2 = inlined_call_operand.vmem [shape: f32[1,32], index: 2, kind: input, shape index: {}]
  %s3 = inlined_call_operand.vmem [shape: f32[32,32], index: 3, kind: input, shape index: {}]
  %s4 = inlined_call_operand.vmem [shape: f32[1,32], index: 4, kind: input, shape index: {}]
  %s5 = inlined_call_operand.vmem [shape: f32[32,8], index: 5, kind: input, shape index: {}]
  %s6 = inlined_call_operand.vmem [shape: f32[1,8], index: 6, kind: input, shape index: {}]
  %s7 = inlined_call_operand.vmem [shape: f32[8,128], index: 7, kind: output, shape index: {}]
  %s8 = sld [smem:[#allocation0]]
  $region42: #{nn_pathway2_forward.1} parent=0
    _
  %s10 = ssub.s32 1, %s8
  %s11 = scalar_select 0, %s10, %s8
  $region1: #{nn_pathway2_forward.1} parent=0
    #allocation2 [shape = 'u8[8192]{0}', space=vmem, size = 0x2000, scoped, tag = 'input window, operand 1, single buffered']
    #allocation3 [shape = 's32[1]{0}', space=sflag, size = 0x4, scoped, tag = 'scoped memory for nn_pathway2_forward.1']
    %12 = vsyncpa [#allocation3], 0
    // Predicated region
    $region2: #{nn_pathway2_forward.1} parent=1 // pred_check
      _
    $region3: #{nn_pathway2_forward.1} parent=1 // pred_check_branch
      %14 = sbr.rel (0) target = $region5
    $region4: #{nn_pathway2_forward.1} parent=1 // pred_region
      _
    $region5: #{nn_pathway2_forward.1} parent=1 // pred_fallthru
      _
    // Predicated region
    $region6: #{nn_pathway2_forward.1} parent=1 // pred_check
      _
    $region7: #{nn_pathway2_forward.1} parent=1 // pred_check_branch
      %16 = sbr.rel (0) target = $region9
    $region8: #{nn_pathway2_forward.1} parent=1 // pred_region
      %18 = vsyncadd [#allocation3], 0
      %s19 = sshll.u32 %s1, 4
      %s20 = int_to_ptr.hbm [resolvable:$true] %s19
      %s21 = sshll.u32 [#allocation2], 4
      %s22 = int_to_ptr.vmem [resolvable:$true] %s21
      %27 = dma.hbm_to_vmem [thread:$0]  %s20, 256, %s22, [#allocation3], 128, 128, 8
    $region9: #{nn_pathway2_forward.1} parent=1 // pred_fallthru
      _
    // Predicated region
    $region10: #{nn_pathway2_forward.1} parent=1 // pred_check
      _
    $region11: #{nn_pathway2_forward.1} parent=1 // pred_check_branch
      %29 = sbr.rel (0) target = $region13
    $region12: #{nn_pathway2_forward.1} parent=1 // pred_region
      _
    $region13: #{nn_pathway2_forward.1} parent=1 // pred_fallthru
      _
    // Predicated region
    $region14: #{nn_pathway2_forward.1} parent=1 // pred_check
      _
    $region15: #{nn_pathway2_forward.1} parent=1 // pred_check_branch
      %31 = sbr.rel (0) target = $region17
    $region16: #{nn_pathway2_forward.1} parent=1 // pred_region
      _
    $region17: #{nn_pathway2_forward.1} parent=1 // pred_fallthru
      _
    // Predicated region
    $region18: #{nn_pathway2_forward.1} parent=1 // pred_check
      _
    $region19: #{nn_pathway2_forward.1} parent=1 // pred_check_branch
      %33 = sbr.rel (0) target = $region21
    $region20: #{nn_pathway2_forward.1} parent=1 // pred_region
      _
    $region21: #{nn_pathway2_forward.1} parent=1 // pred_fallthru
      _
    // Predicated region
    $region22: #{nn_pathway2_forward.1} parent=1 // pred_check
      _
    $region23: #{nn_pathway2_forward.1} parent=1 // pred_check_branch
      %35 = sbr.rel (0) target = $region25
    $region24: #{nn_pathway2_forward.1} parent=1 // pred_region
      _
    $region25: #{nn_pathway2_forward.1} parent=1 // pred_fallthru
      _
    // Predicated region
    $region26: #{nn_pathway2_forward.1} parent=1 // pred_check
      _
    $region27: #{nn_pathway2_forward.1} parent=1 // pred_check_branch
      %37 = sbr.rel (0) target = $region29
    $region28: #{nn_pathway2_forward.1} parent=1 // pred_region
      _
    $region29: #{nn_pathway2_forward.1} parent=1 // pred_fallthru
      _
    // Predicated region
    $region30: #{nn_pathway2_forward.1} parent=1 // pred_check
      _
    $region31: #{nn_pathway2_forward.1} parent=1 // pred_check_branch
      %39 = sbr.rel (0) target = $region33
    $region32: #{nn_pathway2_forward.1} parent=1 // pred_region
      %41 = dma.done [#allocation3], 256
    $region33: #{nn_pathway2_forward.1} parent=1 // pred_fallthru
      _
    %v42 = vld [vmem:[%s0] sm:$0xff]
    %v43 = vld [vmem:[#allocation2] sm:$0xff]
    %v44 = vld [vmem:[#allocation2 + $0x8] sm:$0xff]
    %v45 = vld [vmem:[%s2] sm:$0x1]
    %v47 = vperm.slane %v45, 0
    %vm49 = vcmask 130048
    %v51 = vsel %vm49, %v42, 0
    %53 = vmatpush.msra.mxu0 0.0
    %54 = vmatpush.msra.mxu0 0.0
    %55 = vmatpush.msra.mxu0 0.0
    %56 = vmatpush.msra.mxu0 0.0
    %57 = vmatpush.msra.mxu0 0.0
    %58 = vmatpush.msra.mxu0 0.0
    %59 = vmatpush.msra.mxu0 0.0
    %60 = vmatpush.msra.mxu0 0.0
    %61 = vmatpush.msra.mxu0 0.0
    %62 = vmatpush.msra.mxu0 0.0
    %63 = vmatpush.msra.mxu0 0.0
    %64 = vmatpush.msra.mxu0 0.0
    %65 = vmatpush.msra.mxu0 0.0
    %66 = vmatpush.msra.mxu0 0.0
    %67 = vmatpush.msra.mxu0 %v44
    %68 = vmatpush.msra.mxu0 %v43
    %69 = vmatmul.f32.gmra.mxu0 %v51
    %v70 = vpop.f32.mrf.mxu0
    %v71 = vadd.f32 %v47, %v70
    %72 = vdwg.mxu0
    %v73 = vmax.f32 %v71, 0.0
    %v74 = vld [vmem:[%s3] sm:$0xff]
    %v75 = vld [vmem:[%s3 + $0x8] sm:$0xff]
    %v76 = vld [vmem:[%s3 + $0x10] sm:$0xff]
    %v77 = vld [vmem:[%s3 + $0x18] sm:$0xff]
    %v78 = vld [vmem:[%s4] sm:$0x1]
    %v80 = vperm.slane %v78, 0
    %vm82 = vcmask 261120
    %v84 = vsel %vm82, %v73, 0
    %86 = vmatpush.msra.mxu0 0.0
    %87 = vmatpush.msra.mxu0 0.0
    %88 = vmatpush.msra.mxu0 0.0
    %89 = vmatpush.msra.mxu0 0.0
    %90 = vmatpush.msra.mxu0 0.0
    %91 = vmatpush.msra.mxu0 0.0
    %92 = vmatpush.msra.mxu0 0.0
    %93 = vmatpush.msra.mxu0 0.0
    %94 = vmatpush.msra.mxu0 0.0
    %95 = vmatpush.msra.mxu0 0.0
    %96 = vmatpush.msra.mxu0 0.0
    %97 = vmatpush.msra.mxu0 0.0
    %98 = vmatpush.msra.mxu0 %v77
    %99 = vmatpush.msra.mxu0 %v76
    %100 = vmatpush.msra.mxu0 %v75
    %101 = vmatpush.msra.mxu0 %v74
    %102 = vmatmul.f32.gmra.mxu0 %v84
    %v103 = vpop.f32.mrf.mxu0
    %v104 = vadd.f32 %v80, %v103
    %105 = vdwg.mxu0
    %v106 = vmax.f32 %v104, 0.0
    %v107 = vld [vmem:[%s5] sm:$0xff]
    %v108 = vld [vmem:[%s5 + $0x8] sm:$0xff]
    %v109 = vld [vmem:[%s5 + $0x10] sm:$0xff]
    %v110 = vld [vmem:[%s5 + $0x18] sm:$0xff]
    %v111 = vld [vmem:[%s6] sm:$0x1]
    %v113 = vperm.slane %v111, 0
    %v116 = vsel %vm82, %v106, 0
    %118 = vmatpush.msra.mxu0 0.0
    %119 = vmatpush.msra.mxu0 0.0
    %120 = vmatpush.msra.mxu0 0.0
    %121 = vmatpush.msra.mxu0 0.0
    %122 = vmatpush.msra.mxu0 0.0
    %123 = vmatpush.msra.mxu0 0.0
    %124 = vmatpush.msra.mxu0 0.0
    %125 = vmatpush.msra.mxu0 0.0
    %126 = vmatpush.msra.mxu0 0.0
    %127 = vmatpush.msra.mxu0 0.0
    %128 = vmatpush.msra.mxu0 0.0
    %129 = vmatpush.msra.mxu0 0.0
    %130 = vmatpush.msra.mxu0 %v110
    %131 = vmatpush.msra.mxu0 %v109
    %132 = vmatpush.msra.mxu0 %v108
    %133 = vmatpush.msra.mxu0 %v107
    %134 = vmatmul.f32.gmra.mxu0 %v116
    %v135 = vpop.f32.mrf.mxu0
    %v136 = vadd.f32 %v113, %v135
    %137 = vdwg.mxu0
    %139 = vrot.lane.b32.xlu0 %v136, 32
    %v140 = vpop.permute.xlu0 %139
    %v142 = vsel %vm82, %v106, %v140
    %vm143 = vcmask 326656
    %v144 = vsel %vm143, %v142, 0.0
    %145 = vst [vmem:[%s7] sm:$0xff] %v144
    // Predicated region
    $region34: #{nn_pathway2_forward.1} parent=1 // pred_check
      _
    $region35: #{nn_pathway2_forward.1} parent=1 // pred_check_branch
      %147 = sbr.rel (0) target = $region37
    $region36: #{nn_pathway2_forward.1} parent=1 // pred_region
      _
    $region37: #{nn_pathway2_forward.1} parent=1 // pred_fallthru
      _
    // Predicated region
    $region38: #{nn_pathway2_forward.1} parent=1 // pred_check
      _
    $region39: #{nn_pathway2_forward.1} parent=1 // pred_check_branch
      %149 = sbr.rel (0) target = $region41
    $region40: #{nn_pathway2_forward.1} parent=1 // pred_region
      _
    $region41: #{nn_pathway2_forward.1} parent=1 // pred_fallthru
      _
    %150 = vsyncpa [#allocation3], 1

</llo_original>
